<compile_context>
chip_gen: v5e
topology: v5e:2x2
jax: 0.10.0
libtpu: 0.0.40
codegen_flags: <defaults>
</compile_context>

<pallas_src>
import math

import jax
import jax.numpy as jnp
from jax import lax
from jax.experimental import pallas as pl
from jax.experimental.pallas import tpu as pltpu

HIDDEN = 32  # self.size in the module


# --------------------------------------------------------------------------
# Fused kernel: trunk MLP + fused (action|value) head + softmax(dim=0) +
# argmax over classes.  All refs are full-array VMEM blocks.
# --------------------------------------------------------------------------
def _oracle_kernel(x_ref, w1_ref, b1_ref, w2_ref, b2_ref, wh_ref, bh_ref,
                   av_ref, ap_ref, val_ref):
    n_classes = ap_ref.shape[1]

    x = x_ref[...]                                               # (B, D_in)

    # trunk: Linear -> ReLU -> Linear -> ReLU
    h = jnp.dot(x, w1_ref[...], preferred_element_type=jnp.float32) + b1_ref[...]
    h = jnp.maximum(h, 0.0)
    h = jnp.dot(h, w2_ref[...], preferred_element_type=jnp.float32) + b2_ref[...]
    h = jnp.maximum(h, 0.0)                                      # (B, 32)

    # fused heads: one matmul producing [action_logits | value]
    heads = (jnp.dot(h, wh_ref[...], preferred_element_type=jnp.float32)
             + bh_ref[...])                                      # (B, C+1)
    logits = heads[:, :n_classes]                                # (B, C)
    val_ref[...] = heads[:, n_classes:n_classes + 1]             # (B, 1)

    # action head softmax: nn.Softmax(dim=0) -> over the BATCH axis
    m = jnp.max(logits, axis=0, keepdims=True)
    e = jnp.exp(logits - m)
    p = e / jnp.sum(e, axis=0, keepdims=True)
    ap_ref[...] = p

    # argmax over classes (dim=1 for 2-D input); first-max tie-break like torch
    max_p = jnp.max(p, axis=1, keepdims=True)
    idx = lax.broadcasted_iota(jnp.int32, p.shape, 1)
    av_ref[...] = jnp.min(jnp.where(p == max_p, idx, jnp.int32(n_classes)),
                          axis=1, keepdims=True)                 # (B, 1) int32


# --------------------------------------------------------------------------
# Synthetic parameters in PyTorch nn.Linear layout (out, in), plus a one-time
# prep step (transpose, 2-D biases, head fusion) hoisted out of the forward.
# --------------------------------------------------------------------------
def init_torch_style_params(key, input_size, n_classes):
    def linear(k, fan_in, fan_out):
        k1, k2 = jax.random.split(k)
        bound = 1.0 / math.sqrt(fan_in)
        w = jax.random.uniform(k1, (fan_out, fan_in), jnp.float32, -bound, bound)
        b = jax.random.uniform(k2, (fan_out,), jnp.float32, -bound, bound)
        return w, b

    k1, k2, k3, k4 = jax.random.split(key, 4)
    w1, b1 = linear(k1, input_size, HIDDEN)
    w2, b2 = linear(k2, HIDDEN, HIDDEN)
    wv, bv = linear(k3, HIDDEN, 1)
    wa, ba = linear(k4, HIDDEN, n_classes)
    return dict(w1=w1, b1=b1, w2=w2, b2=b2, wv=wv, bv=bv, wa=wa, ba=ba)


def prep_params(raw):
    """One-time layout prep: (out,in)->(in,out), 2-D biases, fused head."""
    wh = jnp.concatenate([raw["wa"].T, raw["wv"].T], axis=1)   # (32, C+1)
    bh = jnp.concatenate([raw["ba"], raw["bv"]]).reshape(1, -1)
    return dict(
        w1=raw["w1"].T, b1=raw["b1"].reshape(1, -1),
        w2=raw["w2"].T, b2=raw["b2"].reshape(1, -1),
        wh=wh, bh=bh,
        n_classes=int(raw["wa"].shape[0]),
    )


# --------------------------------------------------------------------------
# Forward wrapper: one gridless pallas_call (whole problem fits in VMEM).
# --------------------------------------------------------------------------
def oracle_forward(params, x):
    """x: (B, input_size) f32 -> (action_v (B,), action_p (B,C), value (B,1))."""
    # TODO(synk): the unbatched 1-D input path (softmax/argmax both over
    # dim=0) of the module is not implemented; this wrapper handles 2-D input.
    B = x.shape[0]
    n_classes = params["n_classes"]
    vmem = pl.BlockSpec(memory_space=pltpu.MemorySpace.VMEM)

    av, ap, val = pl.pallas_call(
        _oracle_kernel,
        out_shape=(jax.ShapeDtypeStruct((B, 1), jnp.int32),
                   jax.ShapeDtypeStruct((B, n_classes), jnp.float32),
                   jax.ShapeDtypeStruct((B, 1), jnp.float32)),
        in_specs=[vmem] * 7,
        out_specs=(vmem, vmem, vmem),
    )(x, params["w1"], params["b1"], params["w2"], params["b2"],
      params["wh"], params["bh"])

    return av[:, 0], ap, val


# --------------------------------------------------------------------------
# Pure-JAX reference (verification) — mirrors the PyTorch forward exactly.
# --------------------------------------------------------------------------
def oracle_reference(raw, x):
    h = jnp.maximum(x @ raw["w1"].T + raw["b1"], 0.0)
    h = jnp.maximum(h @ raw["w2"].T + raw["b2"], 0.0)
    value = h @ raw["wv"].T + raw["bv"]
    logits = h @ raw["wa"].T + raw["ba"]
    action_p = jax.nn.softmax(logits, axis=0)      # nn.Softmax(dim=0)
    action_v = jnp.argmax(action_p, axis=1)        # dim_axis = 1 for 2-D input
    return action_v, action_p, value


if __name__ == "__main__":
    key = jax.random.PRNGKey(0)
    pkey, xkey = jax.random.split(key)

    INPUT_SIZE = 16
    N_CLASSES = 8
    BATCH = 2

    raw_params = init_torch_style_params(pkey, INPUT_SIZE, N_CLASSES)
    params = prep_params(raw_params)
    x = jax.random.normal(xkey, (BATCH, INPUT_SIZE), jnp.float32)

    action_v, action_p, value = oracle_forward(params, x)
    action_v = jax.block_until_ready(action_v)
    action_p = jax.block_until_ready(action_p)
    value = jax.block_until_ready(value)

    assert action_v.shape == (BATCH,), action_v.shape
    assert action_p.shape == (BATCH, N_CLASSES), action_p.shape
    assert value.shape == (BATCH, 1), value.shape

    ref_v, ref_p, ref_val = oracle_reference(raw_params, x)
    assert jnp.all(action_v == ref_v), (action_v, ref_v)
    assert jnp.allclose(action_p, ref_p, rtol=1e-5, atol=1e-5), \
        float(jnp.max(jnp.abs(action_p - ref_p)))
    assert jnp.allclose(value, ref_val, rtol=1e-5, atol=1e-5), \
        float(jnp.max(jnp.abs(value - ref_val)))

    print("KERNEL_OK")
</pallas_src>

<mosaic_0001>
module attributes {stable_mosaic.version = 11 : i64} {
  func.func @_oracle_kernel(%arg0: memref<2x16xf32, #tpu.memory_space<vmem>>, %arg1: memref<16x32xf32, #tpu.memory_space<vmem>>, %arg2: memref<1x32xf32, #tpu.memory_space<vmem>>, %arg3: memref<32x32xf32, #tpu.memory_space<vmem>>, %arg4: memref<1x32xf32, #tpu.memory_space<vmem>>, %arg5: memref<32x9xf32, #tpu.memory_space<vmem>>, %arg6: memref<1x9xf32, #tpu.memory_space<vmem>>, %arg7: memref<2x1xi32, #tpu.memory_space<vmem>>, %arg8: memref<2x8xf32, #tpu.memory_space<vmem>>, %arg9: memref<2x1xf32, #tpu.memory_space<vmem>>) attributes {dimension_semantics = [], scalar_prefetch = 0 : i64, scratch_operands = 0 : i64, tpu.core_type = #tpu.core_type<tc>} {
    %c0 = arith.constant 0 : index
    %c0_0 = arith.constant 0 : index
    %0 = vector.load %arg0[%c0, %c0_0] : memref<2x16xf32, #tpu.memory_space<vmem>>, vector<2x16xf32>
    %c0_1 = arith.constant 0 : index
    %c0_2 = arith.constant 0 : index
    %1 = vector.load %arg1[%c0_1, %c0_2] : memref<16x32xf32, #tpu.memory_space<vmem>>, vector<16x32xf32>
    %cst = arith.constant dense<0.000000e+00> : vector<2x32xf32>
    %2 = tpu.matmul %0, %1, %cst {dimension_numbers = #tpu.dot_dimension_numbers<[1], [0], [0], [1], [0, 0, 1, 1], [], []>} : vector<2x16xf32>, vector<16x32xf32>, vector<2x32xf32> -> vector<2x32xf32>
    %c0_3 = arith.constant 0 : index
    %c0_4 = arith.constant 0 : index
    %3 = vector.load %arg2[%c0_3, %c0_4] : memref<1x32xf32, #tpu.memory_space<vmem>>, vector<1x32xf32>
    %4 = vector.broadcast %3 : vector<1x32xf32> to vector<2x32xf32>
    %5 = arith.addf %2, %4 : vector<2x32xf32>
    %cst_5 = arith.constant 0.000000e+00 : f32
    %6 = vector.broadcast %cst_5 : f32 to vector<2x32xf32>
    %7 = arith.maximumf %5, %6 : vector<2x32xf32>
    %c0_6 = arith.constant 0 : index
    %c0_7 = arith.constant 0 : index
    %8 = vector.load %arg3[%c0_6, %c0_7] : memref<32x32xf32, #tpu.memory_space<vmem>>, vector<32x32xf32>
    %cst_8 = arith.constant dense<0.000000e+00> : vector<2x32xf32>
    %9 = tpu.matmul %7, %8, %cst_8 {dimension_numbers = #tpu.dot_dimension_numbers<[1], [0], [0], [1], [0, 0, 1, 1], [], []>} : vector<2x32xf32>, vector<32x32xf32>, vector<2x32xf32> -> vector<2x32xf32>
    %c0_9 = arith.constant 0 : index
    %c0_10 = arith.constant 0 : index
    %10 = vector.load %arg4[%c0_9, %c0_10] : memref<1x32xf32, #tpu.memory_space<vmem>>, vector<1x32xf32>
    %11 = vector.broadcast %10 : vector<1x32xf32> to vector<2x32xf32>
    %12 = arith.addf %9, %11 : vector<2x32xf32>
    %cst_11 = arith.constant 0.000000e+00 : f32
    %13 = vector.broadcast %cst_11 : f32 to vector<2x32xf32>
    %14 = arith.maximumf %12, %13 : vector<2x32xf32>
    %c0_12 = arith.constant 0 : index
    %c0_13 = arith.constant 0 : index
    %15 = vector.load %arg5[%c0_12, %c0_13] : memref<32x9xf32, #tpu.memory_space<vmem>>, vector<32x9xf32>
    %cst_14 = arith.constant dense<0.000000e+00> : vector<2x9xf32>
    %16 = tpu.matmul %14, %15, %cst_14 {dimension_numbers = #tpu.dot_dimension_numbers<[1], [0], [0], [1], [0, 0, 1, 1], [], []>} : vector<2x32xf32>, vector<32x9xf32>, vector<2x9xf32> -> vector<2x9xf32>
    %c0_15 = arith.constant 0 : index
    %c0_16 = arith.constant 0 : index
    %17 = vector.load %arg6[%c0_15, %c0_16] : memref<1x9xf32, #tpu.memory_space<vmem>>, vector<1x9xf32>
    %18 = vector.broadcast %17 : vector<1x9xf32> to vector<2x9xf32>
    %19 = arith.addf %16, %18 : vector<2x9xf32>
    %20 = vector.extract_strided_slice %19 {offsets = [0, 0], sizes = [2, 8], strides = [1, 1]} : vector<2x9xf32> to vector<2x8xf32>
    %21 = vector.extract_strided_slice %19 {offsets = [0, 8], sizes = [2, 1], strides = [1, 1]} : vector<2x9xf32> to vector<2x1xf32>
    %c0_17 = arith.constant 0 : index
    %c0_18 = arith.constant 0 : index
    %22 = vector.load %arg9[%c0_17, %c0_18] : memref<2x1xf32, #tpu.memory_space<vmem>>, vector<2x1xf32>
    tpu.vector_store %arg9[%c0_17, %c0_18], %21 {strides = array<i32>} : memref<2x1xf32, #tpu.memory_space<vmem>>, vector<2x1xf32>,
    %cst_19 = arith.constant dense<0xFF800000> : vector<8xf32>
    %23 = vector.multi_reduction <maximumf>, %20, %cst_19 [0] : vector<2x8xf32> to vector<8xf32>
    %24 = vector.shape_cast %23 : vector<8xf32> to vector<1x8xf32>
    %25 = vector.broadcast %24 : vector<1x8xf32> to vector<2x8xf32>
    %26 = arith.subf %20, %25 : vector<2x8xf32>
    %27 = math.exp %26 : vector<2x8xf32>
    %cst_20 = arith.constant dense<0.000000e+00> : vector<8xf32>
    %28 = vector.multi_reduction <add>, %27, %cst_20 [0] : vector<2x8xf32> to vector<8xf32>
    %29 = vector.shape_cast %28 : vector<8xf32> to vector<1x8xf32>
    %30 = vector.broadcast %29 : vector<1x8xf32> to vector<2x8xf32>
    %31 = arith.divf %27, %30 : vector<2x8xf32>
    %c0_21 = arith.constant 0 : index
    %c0_22 = arith.constant 0 : index
    %32 = vector.load %arg8[%c0_21, %c0_22] : memref<2x8xf32, #tpu.memory_space<vmem>>, vector<2x8xf32>
    tpu.vector_store %arg8[%c0_21, %c0_22], %31 {strides = array<i32>} : memref<2x8xf32, #tpu.memory_space<vmem>>, vector<2x8xf32>,
    %cst_23 = arith.constant dense<0xFF800000> : vector<2xf32>
    %33 = vector.multi_reduction <maximumf>, %31, %cst_23 [1] : vector<2x8xf32> to vector<2xf32>
    %34 = vector.shape_cast %33 : vector<2xf32> to vector<2x1xf32>
    %35 = tpu.iota {dimensions = array<i32: 1>} : vector<2x8xi32>
    %36 = vector.broadcast %34 : vector<2x1xf32> to vector<2x8xf32>
    %37 = arith.cmpf oeq, %31, %36 : vector<2x8xf32>
    %c8_i32 = arith.constant 8 : i32
    %38 = vector.broadcast %c8_i32 : i32 to vector<2x8xi32>
    %39 = arith.select %37, %35, %38 : vector<2x8xi1>, vector<2x8xi32>
    %cst_24 = arith.constant dense<2147483647> : vector<2xi32>
    %40 = vector.multi_reduction <minsi>, %39, %cst_24 [1] : vector<2x8xi32> to vector<2xi32>
    %41 = vector.shape_cast %40 : vector<2xi32> to vector<2x1xi32>
    %c0_25 = arith.constant 0 : index
    %c0_26 = arith.constant 0 : index
    %42 = vector.load %arg7[%c0_25, %c0_26] : memref<2x1xi32, #tpu.memory_space<vmem>>, vector<2x1xi32>
    tpu.vector_store %arg7[%c0_25, %c0_26], %41 {strides = array<i32>} : memref<2x1xi32, #tpu.memory_space<vmem>>, vector<2x1xi32>,
    return
  }
}

</mosaic_0001>

<llo_original>
// kernel: tpu_custom_call.1
$region0: #{tpu_custom_call.1}
  #allocation0 [shape = 'u32[]', space=smem, size = 0x4, offset = 0x4, fixed_abs, tag = 'smem constant byte address 0x4 - core index']
  #allocation1 [shape = 'u32[72,128]{1,0:T(1,128)}', space=vmem, size = 0x9000, scoped, tag = 'internal scratch']
  %s0 = inlined_call_operand.vmem [shape: f32[2,16], index: 0, kind: input, shape index: {}]
  %s1 = inlined_call_operand.vmem [shape: f32[16,32], index: 1, kind: input, shape index: {}]
  %s2 = inlined_call_operand.hbm [shape: f32[1,32], index: 2, kind: input, shape index: {}]
  %s3 = inlined_call_operand.vmem [shape: f32[32,32], index: 3, kind: input, shape index: {}]
  %s4 = inlined_call_operand.vmem [shape: f32[1,32], index: 4, kind: input, shape index: {}]
  %s5 = inlined_call_operand.vmem [shape: f32[32,9], index: 5, kind: input, shape index: {}]
  %s6 = inlined_call_operand.vmem [shape: f32[1,9], index: 6, kind: input, shape index: {}]
  %s7 = inlined_call_operand.vmem [shape: s32[2,1], index: 7, kind: output, shape index: {0}]
  %s8 = inlined_call_operand.hbm [shape: f32[2,8], index: 8, kind: output, shape index: {1}]
  %s9 = inlined_call_operand.vmem [shape: f32[2,1], index: 9, kind: output, shape index: {2}]
  %10 = xla_tuple %s7, %s8, %s9
  %s11 = sld [smem:[#allocation0]]
  $region58: #{tpu_custom_call.1} parent=0
    _
  %s13 = ssub.s32 1, %s11
  %s14 = scalar_select 0, %s13, %s11
  $region1: #{tpu_custom_call.1} parent=0
    #allocation2 [shape = 'u8[512]{0}', space=vmem, size = 0x400, scoped, tag = 'input window, operand 2, single buffered']
    #allocation3 [shape = 's32[1]{0}', space=sflag, size = 0x4, scoped, tag = 'scoped memory for tpu_custom_call.1']
    #allocation4 [shape = 's32[1]{0}', space=sflag, size = 0x4, scoped, tag = 'scoped memory for tpu_custom_call.1']
    #allocation5 [shape = 'u8[1024]{0}', space=vmem, size = 0x400, scoped, tag = 'output window, operand 1, single buffered']
    %15 = vsyncpa [#allocation3], 0
    %16 = vsyncpa [#allocation4], 0
    // Predicated region
    $region2: #{tpu_custom_call.1} parent=1 // pred_check
      _
    $region3: #{tpu_custom_call.1} parent=1 // pred_check_branch
      %18 = sbr.rel (0) target = $region5
    $region4: #{tpu_custom_call.1} parent=1 // pred_region
      _
    $region5: #{tpu_custom_call.1} parent=1 // pred_fallthru
      _
    // Predicated region
    $region6: #{tpu_custom_call.1} parent=1 // pred_check
      _
    $region7: #{tpu_custom_call.1} parent=1 // pred_check_branch
      %20 = sbr.rel (0) target = $region9
    $region8: #{tpu_custom_call.1} parent=1 // pred_region
      _
    $region9: #{tpu_custom_call.1} parent=1 // pred_fallthru
      _
    // Predicated region
    $region10: #{tpu_custom_call.1} parent=1 // pred_check
      _
    $region11: #{tpu_custom_call.1} parent=1 // pred_check_branch
      %22 = sbr.rel (0) target = $region13
    $region12: #{tpu_custom_call.1} parent=1 // pred_region
      %24 = vsyncadd [#allocation3], 0
      %s26 = sshll.u32 %s2, 4
      %s27 = int_to_ptr.hbm [resolvable:$true] %s26
      %s28 = sshll.u32 [#allocation2], 4
      %s29 = int_to_ptr.vmem [resolvable:$true] %s28
      %31 = dma.hbm_to_vmem [thread:$0]  %s27, 16, %s29, [#allocation3]
    $region13: #{tpu_custom_call.1} parent=1 // pred_fallthru
      _
    // Predicated region
    $region14: #{tpu_custom_call.1} parent=1 // pred_check
      _
    $region15: #{tpu_custom_call.1} parent=1 // pred_check_branch
      %33 = sbr.rel (0) target = $region17
    $region16: #{tpu_custom_call.1} parent=1 // pred_region
      _
    $region17: #{tpu_custom_call.1} parent=1 // pred_fallthru
      _
    // Predicated region
    $region18: #{tpu_custom_call.1} parent=1 // pred_check
      _
    $region19: #{tpu_custom_call.1} parent=1 // pred_check_branch
      %35 = sbr.rel (0) target = $region21
    $region20: #{tpu_custom_call.1} parent=1 // pred_region
      _
    $region21: #{tpu_custom_call.1} parent=1 // pred_fallthru
      _
    // Predicated region
    $region22: #{tpu_custom_call.1} parent=1 // pred_check
      _
    $region23: #{tpu_custom_call.1} parent=1 // pred_check_branch
      %37 = sbr.rel (0) target = $region25
    $region24: #{tpu_custom_call.1} parent=1 // pred_region
      _
    $region25: #{tpu_custom_call.1} parent=1 // pred_fallthru
      _
    // Predicated region
    $region26: #{tpu_custom_call.1} parent=1 // pred_check
      _
    $region27: #{tpu_custom_call.1} parent=1 // pred_check_branch
      %39 = sbr.rel (0) target = $region29
    $region28: #{tpu_custom_call.1} parent=1 // pred_region
      _
    $region29: #{tpu_custom_call.1} parent=1 // pred_fallthru
      _
    // Predicated region
    $region30: #{tpu_custom_call.1} parent=1 // pred_check
      _
    $region31: #{tpu_custom_call.1} parent=1 // pred_check_branch
      %41 = sbr.rel (0) target = $region33
    $region32: #{tpu_custom_call.1} parent=1 // pred_region
      %43 = dma.done [#allocation3], 16
    $region33: #{tpu_custom_call.1} parent=1 // pred_fallthru
      _
    %v44 = vld [vmem:[%s0] sm:$0x3]
    %v45 = vld [vmem:[%s1] sm:$0xff]
    %v46 = vld [vmem:[%s1 + $0x8] sm:$0xff]
    %v47 = vld [vmem:[#allocation2] sm:$0x1]
    %v49 = vperm.slane %v47, 0
    %vm51 = vcmask 130048
    %v53 = vsel %vm51, %v44, 0
    %55 = vmatpush.msra.mxu0 0.0
    %56 = vmatpush.msra.mxu0 0.0
    %57 = vmatpush.msra.mxu0 0.0
    %58 = vmatpush.msra.mxu0 0.0
    %59 = vmatpush.msra.mxu0 0.0
    %60 = vmatpush.msra.mxu0 0.0
    %61 = vmatpush.msra.mxu0 0.0
    %62 = vmatpush.msra.mxu0 0.0
    %63 = vmatpush.msra.mxu0 0.0
    %64 = vmatpush.msra.mxu0 0.0
    %65 = vmatpush.msra.mxu0 0.0
    %66 = vmatpush.msra.mxu0 0.0
    %67 = vmatpush.msra.mxu0 0.0
    %68 = vmatpush.msra.mxu0 0.0
    %69 = vmatpush.msra.mxu0 %v46
    %70 = vmatpush.msra.mxu0 %v45
    %71 = vmatmul.f32.gmra.mxu0 %v53
    %v72 = vpop.f32.mrf.mxu0
    %v73 = vadd.f32 %v49, %v72
    %74 = vdwg.mxu0
    %v75 = vmax.f32 %v73, 0.0
    %v76 = vld [vmem:[%s3] sm:$0xff]
    %v77 = vld [vmem:[%s3 + $0x8] sm:$0xff]
    %v78 = vld [vmem:[%s3 + $0x10] sm:$0xff]
    %v79 = vld [vmem:[%s3 + $0x18] sm:$0xff]
    %v80 = vld [vmem:[%s4] sm:$0x1]
    %v82 = vperm.slane %v80, 0
    %vm84 = vcmask 261120
    %v86 = vsel %vm84, %v75, 0
    %88 = vmatpush.msra.mxu0 0.0
    %89 = vmatpush.msra.mxu0 0.0
    %90 = vmatpush.msra.mxu0 0.0
    %91 = vmatpush.msra.mxu0 0.0
    %92 = vmatpush.msra.mxu0 0.0
    %93 = vmatpush.msra.mxu0 0.0
    %94 = vmatpush.msra.mxu0 0.0
    %95 = vmatpush.msra.mxu0 0.0
    %96 = vmatpush.msra.mxu0 0.0
    %97 = vmatpush.msra.mxu0 0.0
    %98 = vmatpush.msra.mxu0 0.0
    %99 = vmatpush.msra.mxu0 0.0
    %100 = vmatpush.msra.mxu0 %v79
    %101 = vmatpush.msra.mxu0 %v78
    %102 = vmatpush.msra.mxu0 %v77
    %103 = vmatpush.msra.mxu0 %v76
    %104 = vmatmul.f32.gmra.mxu0 %v86
    %v105 = vpop.f32.mrf.mxu0
    %v106 = vadd.f32 %v82, %v105
    %107 = vdwg.mxu0
    %v108 = vmax.f32 %v106, 0.0
    %v109 = vld [vmem:[%s5] sm:$0xff]
    %v110 = vld [vmem:[%s5 + $0x8] sm:$0xff]
    %v111 = vld [vmem:[%s5 + $0x10] sm:$0xff]
    %v112 = vld [vmem:[%s5 + $0x18] sm:$0xff]
    %v113 = vld [vmem:[%s6] sm:$0x1]
    %v115 = vperm.slane %v113, 0
    %v118 = vsel %vm84, %v108, 0
    %120 = vmatpush.msra.mxu0 0.0
    %121 = vmatpush.msra.mxu0 0.0
    %122 = vmatpush.msra.mxu0 0.0
    %123 = vmatpush.msra.mxu0 0.0
    %124 = vmatpush.msra.mxu0 0.0
    %125 = vmatpush.msra.mxu0 0.0
    %126 = vmatpush.msra.mxu0 0.0
    %127 = vmatpush.msra.mxu0 0.0
    %128 = vmatpush.msra.mxu0 0.0
    %129 = vmatpush.msra.mxu0 0.0
    %130 = vmatpush.msra.mxu0 0.0
    %131 = vmatpush.msra.mxu0 0.0
    %132 = vmatpush.msra.mxu0 %v112
    %133 = vmatpush.msra.mxu0 %v111
    %134 = vmatpush.msra.mxu0 %v110
    %135 = vmatpush.msra.mxu0 %v109
    %136 = vmatmul.f32.gmra.mxu0 %v118
    %v137 = vpop.f32.mrf.mxu0
    %v138 = vadd.f32 %v115, %v137
    %139 = vdwg.mxu0
    %141 = vrot.lane.b32.xlu0 %v138, 120
    %v142 = vpop.permute.xlu0 %141
    %vm144 = vcmask 1024
    %145 = vst.msk [vmem:[%s9] sm:$0x3] %vm144, %v142
    %vm146 = vcmask 58368
    %v147 = vsel %vm146, %v138, -inf
    %v148 = vrot.slane %v147, 4
    %v149 = vmax.f32 %v147, %v148
    %v150 = vrot.slane %v149, 2
    %v151 = vmax.f32 %v149, %v150
    %v152 = vrot.slane %v151, 1
    %v153 = vmax.f32 %v151, %v152
    %v154 = vsub.f32 %v138, %v153
    %v155 = vmul.f32 %v154, 1.442695
    %v156 = vpow.pop %v155
    %v157 = vsel %vm146, %v156, 0.0
    %v158 = vrot.slane %v157, 4
    %v159 = vadd.f32 %v157, %v158
    %v160 = vrot.slane %v159, 2
    %v161 = vadd.f32 %v159, %v160
    %v162 = vrot.slane %v161, 1
    %v163 = vadd.f32 %v161, %v162
    %v164 = vrcp.pop %v163
    %v165 = vmul.f32 %v163, %v164
    %v166 = vsub.f32 1.0, %v165
    %v167 = vmul.f32 %v164, %v166
    %v168 = vadd.f32 %v164, %v167
    %vm169 = vweird.f32 %v163
    %vm170 = vweird.f32 %v164
    %vm171 = vmor %vm169, %vm170
    %v172 = vsel %vm171, %v164, %v168
    %v173 = vand.u32 2147483647, %v163
    %vm174 = vcmp.eq.f32.partialorder %v173, 8.507059e+37
    %v175 = vand.u32 %v163, 2147483648
    %v176 = vor.u32 1.1754944e-38, %v175
    %v177 = vsel %vm174, %v176, %v172
    %v178 = vmul.f32 %v156, %v177
    %179 = vst.msk [vmem:[#allocation5] sm:$0x3] %vm146, %v178
    %v180 = vsel %vm146, %v178, -inf
    %181 = vmax.xlane.f32.xlu0 %v180
    %v182 = vpop.xlane.xlu0 %181
    %v183 = vlaneseq
    %v184 = vand.u32 %v183, 127
    %vm185 = vcmp.eq.f32.partialorder %v178, %v182
    %v186 = vsel %vm185, %v184, 8
    %v187 = vsel %vm146, %v186, 2147483647
    %v188 = vand.u32 %v187, 65535
    %v189 = vshra.s32 %v187, 16
    %v190 = vcvt.s32.f32 %v188
    %v191 = vcvt.s32.f32 %v189
    %192 = vmin.xlane.f32.xlu0 %v191
    %v193 = vpop.xlane.xlu0 %192
    %vm194 = vcmp.eq.f32.partialorder %v191, %v193
    %v195 = vsel %vm194, %v190, inf
    %196 = vmin.xlane.f32.xlu0 %v195
    %v197 = vpop.xlane.xlu0 %196
    %v198 = vcvt.f32.s32 %v197
    %v199 = vcvt.f32.s32 %v193
    %v200 = vshll.u32 %v199, 16
    %v201 = vadd.s32 %v200, %v198
    %202 = vst.msk [vmem:[%s7] sm:$0x3] %vm144, %v201
    // Predicated region
    $region34: #{tpu_custom_call.1} parent=1 // pred_check
      _
    $region35: #{tpu_custom_call.1} parent=1 // pred_check_branch
      %204 = sbr.rel (0) target = $region37
    $region36: #{tpu_custom_call.1} parent=1 // pred_region
      _
    $region37: #{tpu_custom_call.1} parent=1 // pred_fallthru
      _
    // Predicated region
    $region38: #{tpu_custom_call.1} parent=1 // pred_check
      _
    $region39: #{tpu_custom_call.1} parent=1 // pred_check_branch
      %206 = sbr.rel (0) target = $region41
    $region40: #{tpu_custom_call.1} parent=1 // pred_region
      %208 = vsyncadd [#allocation4], 0
      %s210 = sshll.u32 [#allocation5], 4
      %s211 = int_to_ptr.vmem [resolvable:$true] %s210
      %s212 = sshll.u32 %s8, 4
      %s213 = int_to_ptr.hbm [resolvable:$true] %s212
      %215 = dma.vmem_to_hbm [thread:$0]  %s211, 32, %s213, [#allocation4]
    $region41: #{tpu_custom_call.1} parent=1 // pred_fallthru
      _
    // Predicated region
    $region42: #{tpu_custom_call.1} parent=1 // pred_check
      _
    $region43: #{tpu_custom_call.1} parent=1 // pred_check_branch
      %217 = sbr.rel (0) target = $region45
    $region44: #{tpu_custom_call.1} parent=1 // pred_region
      _
    $region45: #{tpu_custom_call.1} parent=1 // pred_fallthru
      _
    // Predicated region
    $region46: #{tpu_custom_call.1} parent=1 // pred_check
      _
    $region47: #{tpu_custom_call.1} parent=1 // pred_check_branch
      %219 = sbr.rel (0) target = $region49
    $region48: #{tpu_custom_call.1} parent=1 // pred_region
      _
    $region49: #{tpu_custom_call.1} parent=1 // pred_fallthru
      _
    // Predicated region
    $region50: #{tpu_custom_call.1} parent=1 // pred_check
      _
    $region51: #{tpu_custom_call.1} parent=1 // pred_check_branch
      %221 = sbr.rel (0) target = $region53
    $region52: #{tpu_custom_call.1} parent=1 // pred_region
      %223 = dma.done [#allocation4], 32
    $region53: #{tpu_custom_call.1} parent=1 // pred_fallthru
      _
    // Predicated region
    $region54: #{tpu_custom_call.1} parent=1 // pred_check
      _
    $region55: #{tpu_custom_call.1} parent=1 // pred_check_branch
      %225 = sbr.rel (0) target = $region57
    $region56: #{tpu_custom_call.1} parent=1 // pred_region
      _
    $region57: #{tpu_custom_call.1} parent=1 // pred_fallthru
      _
    %226 = vsyncpa [#allocation3], 1
    %227 = vsyncpa [#allocation4], 1

</llo_original>
